<compile_context>
chip_gen: v7x
topology: tpu7x:2x2x1
jax: 0.10.0
libtpu: 0.0.40
codegen_flags: <defaults>
</compile_context>

<pallas_src>
import functools

import jax
import jax.numpy as jnp
from jax.experimental import pallas as pl
from jax.experimental.pallas import tpu as pltpu


def _round_up(x, m):
    return ((x + m - 1) // m) * m


def _sublane_align(itemsize):
    # Sub-32-bit dtypes pack along sublanes: keep row counts a multiple of the
    # packing factor (8 rows f32, 16 bf16/fp16, 32 int8/fp8).
    return max(8, 32 // max(1, itemsize))


def _vmem_ceiling_bytes():
    cap = 128 * 1024 * 1024
    try:
        info = pltpu.get_tpu_info()
        cap = int(getattr(info, "vmem_capacity_bytes", cap)) or cap
    except Exception:
        pass
    return (cap * 3) // 4       # headroom for Mosaic internal scratch


def _choose_tile_n(n, c, itemsize, align, vmem_ceiling,
                   target_tile_bytes=8 * 1024 * 1024,
                   max_rows=8192, min_tiles=8):
    """Rows per grid step: aim at ~8 MiB/step but keep >= min_tiles steps."""
    # VMEM bytes per row: logits row + lane-padded (x128) int32 target row.
    per_row = c * itemsize + 128 * 4
    rows = max(align, target_tile_bytes // per_row)
    rows = min(rows, max_rows)
    # Keep enough grid steps for megacore load balancing (2 TCs on v7x).
    rows = min(rows, max(align, _round_up(pl.cdiv(n, min_tiles), align)))
    # Keep the double-buffered working set well under the VMEM ceiling.
    rows = min(rows, max(align, (vmem_ceiling // 3) // per_row))
    return max(align, (rows // align) * align)


def _choose_row_block(tile_n, c, align, target_bytes=32 * 1024):
    """Rows per inner (in-VMEM) pass: keep row_blk*C f32 roughly vreg-resident."""
    target = max(align, target_bytes // max(1, c * 4))
    blk = align
    cand = align
    limit = min(256, tile_n, target)
    while cand <= limit:
        if tile_n % cand == 0:
            blk = cand
        cand *= 2
    return blk


def _ls_ce_kernel(x_ref, tgt_ref, partial_ref, *, n_total, tile_n, c,
                  row_blk, unroll):
    """One row tile -> (8, 128) partial block with per-tile nll/smooth sums."""
    i = pl.program_id(0)
    nb = tile_n // row_blk

    def row_block_sums(r0):
        # Single streaming read of this row block from VMEM; the reductions
        # below all work on the register-resident (row_blk, c) f32 block.
        xc = x_ref[pl.ds(r0, row_blk), :].astype(jnp.float32)     # (row_blk, c)
        t = tgt_ref[pl.ds(r0, row_blk), :]                        # (row_blk, 1)

        m = jnp.max(xc, axis=-1, keepdims=True)                   # (row_blk, 1)
        s = jnp.sum(xc, axis=-1, keepdims=True)
        e = jnp.sum(jnp.exp(xc - m), axis=-1, keepdims=True)
        logz = m + jnp.log(e)

        # x[row, target[row]] via per-vreg iota + compare + select.  Keep it a
        # true select: garbage rows of the ragged last tile must not leak
        # NaN/Inf into the partial sums.
        col = jax.lax.broadcasted_iota(jnp.int32, xc.shape, 1)
        xt = jnp.sum(jnp.where(col == t, xc, 0.0), axis=-1, keepdims=True)

        # Mask rows past the true N (ragged last tile reads padded garbage).
        row = jax.lax.broadcasted_iota(jnp.int32, (row_blk, 1), 0)
        valid = (i * tile_n + r0 + row) < n_total
        nll = jnp.where(valid, logz - xt, 0.0)
        smooth = jnp.where(valid, c * logz - s, 0.0)
        return (jnp.sum(nll, axis=0, keepdims=True),
                jnp.sum(smooth, axis=0, keepdims=True))           # (1, 1) each

    if nb == 1:
        nll_acc, smooth_acc = row_block_sums(0)
    else:
        def body(rb, carry):
            a, b = carry
            da, db = row_block_sums(pl.multiple_of(rb * row_blk, row_blk))
            return a + da, b + db
        zero = jnp.zeros((1, 1), jnp.float32)
        nll_acc, smooth_acc = jax.lax.fori_loop(
            0, nb, body, (zero, zero), unroll=unroll)

    # Lane-dense (8, 128) partial block: [0,0] = nll sum, [0,1] = smooth sum.
    lane = jax.lax.broadcasted_iota(jnp.int32, (8, 128), 1)
    srow = jax.lax.broadcasted_iota(jnp.int32, (8, 128), 0)
    partial_ref[...] = jnp.where(
        (srow == 0) & (lane == 0), nll_acc[0, 0],
        jnp.where((srow == 0) & (lane == 1), smooth_acc[0, 0], 0.0)
    ).astype(jnp.float32)


def label_smoothing_cross_entropy(output, target, smoothing=0.1,
                                  reduction="mean", tile_n=None,
                                  extra_logits_buffering=None):
    """output: (N, C) float logits; target: (N,) int class ids. Scalar f32."""
    if reduction not in ("mean", "sum"):
        # TODO(synk): reduction='none' (per-row vector) not implemented.
        raise NotImplementedError("only 'mean' and 'sum' reductions supported")

    n, c = output.shape
    itemsize = jnp.dtype(output.dtype).itemsize
    align = _sublane_align(itemsize)
    vmem_ceiling = _vmem_ceiling_bytes()

    if tile_n is None:
        tile_n = _choose_tile_n(n, c, itemsize, align, vmem_ceiling)
    tile_n = max(align, _round_up(int(tile_n), align))
    num_tiles = pl.cdiv(n, tile_n)

    row_blk = _choose_row_block(tile_n, c, align)
    nb = tile_n // row_blk
    unroll = 2 if (nb > 1 and nb % 2 == 0) else 1

    tgt2d = target.astype(jnp.int32).reshape(n, 1)

    kernel = functools.partial(
        _ls_ce_kernel, n_total=n, tile_n=tile_n, c=c,
        row_blk=row_blk, unroll=unroll)

    # Advisory cost estimate for XLA's scheduler.
    cost = pl.CostEstimate(
        flops=6 * n * c,
        transcendentals=n * c + n,
        bytes_accessed=n * c * itemsize + n * 4 + num_tiles * 8 * 128 * 4,
    )

    # VMEM: double-buffered logits tile + (lane-padded to 128) target tile
    # + double-buffered (8,128) output + slack, capped by the per-core budget
    # (important on v7x: 64 MiB per TC vs 128 MiB on v5e/v6e).
    logits_tile_bytes = tile_n * c * itemsize
    tgt_tile_bytes = tile_n * 128 * 4
    need = 2 * (logits_tile_bytes + tgt_tile_bytes) + 2 * 8 * 128 * 4 + (4 << 20)
    vmem_limit = int(min(vmem_ceiling, max(16 * 1024 * 1024, need)))

    logits_spec_kwargs = {}
    if extra_logits_buffering:
        # Optional v6e-only knob: triple-buffer the logits stream if a profile
        # shows exposed input DMA at the chosen tile size.
        logits_spec_kwargs["pipeline_mode"] = pl.Buffered(int(extra_logits_buffering))

    partials = pl.pallas_call(
        kernel,
        out_shape=jax.ShapeDtypeStruct((num_tiles * 8, 128), jnp.float32),
        grid_spec=pltpu.PrefetchScalarGridSpec(
            num_scalar_prefetch=0,
            grid=(num_tiles,),
            in_specs=[
                pl.BlockSpec((tile_n, c), lambda i: (i, 0), **logits_spec_kwargs),
                pl.BlockSpec((tile_n, 1), lambda i: (i, 0)),
            ],
            out_specs=pl.BlockSpec((8, 128), lambda i: (i, 0)),
        ),
        compiler_params=pltpu.CompilerParams(
            dimension_semantics=("parallel",),
            vmem_limit_bytes=vmem_limit,
        ),
        cost_estimate=cost,
    )(output, tgt2d)

    # Tiny final reduce + blend in the wrapper (partial blocks are zero except
    # row 0 lanes 0/1 of each tile, so a plain column sum is exact).
    nll = jnp.sum(partials[:, 0])
    smooth = jnp.sum(partials[:, 1])
    if reduction == "mean":
        nll = nll / n
        smooth = smooth / n
    eps = float(smoothing)
    return (1.0 - eps) * nll + eps * (smooth / c)


def _reference(output, target, smoothing=0.1, reduction="mean"):
    logp = jax.nn.log_softmax(output.astype(jnp.float32), axis=-1)
    n, c = output.shape
    smooth = -jnp.sum(logp, axis=-1)
    nll = -logp[jnp.arange(n), target]
    if reduction == "mean":
        smooth, nll = jnp.mean(smooth), jnp.mean(nll)
    else:
        smooth, nll = jnp.sum(smooth), jnp.sum(nll)
    return (1.0 - smoothing) * nll + smoothing * (smooth / c)


if __name__ == "__main__":
    key = jax.random.PRNGKey(0)
    k1, k2, k3, k4, k5, k6 = jax.random.split(key, 6)

    cases = []
    # Multi-tile pipelining + ragged last tile (explicit small tile).
    cases.append(dict(
        name="f32_explicit_tile",
        x=jax.random.normal(k1, (100, 256), dtype=jnp.float32),
        t=jax.random.randint(k2, (100,), 0, 256, dtype=jnp.int32),
        tile_n=32))
    # Auto tile selection + multi-row-block inner fori_loop (nb > 1).
    cases.append(dict(
        name="f32_auto_tile",
        x=jax.random.normal(k3, (256, 1024), dtype=jnp.float32),
        t=jax.random.randint(k4, (256,), 0, 1024, dtype=jnp.int32),
        tile_n=None))
    # bf16 logits kept in bf16 on the HBM side (f32 accumulate in-kernel).
    cases.append(dict(
        name="bf16_auto_tile",
        x=jax.random.normal(k5, (96, 320), dtype=jnp.float32).astype(jnp.bfloat16),
        t=jax.random.randint(k6, (96,), 0, 320, dtype=jnp.int32),
        tile_n=None))

    for case in cases:
        for reduction in ("mean", "sum"):
            loss = label_smoothing_cross_entropy(
                case["x"], case["t"], smoothing=0.1,
                reduction=reduction, tile_n=case["tile_n"])
            loss = jax.block_until_ready(loss)
            ref = _reference(case["x"], case["t"], smoothing=0.1,
                             reduction=reduction)
            assert jnp.allclose(loss, ref, atol=2e-3, rtol=2e-4), (
                case["name"], reduction, loss, ref)

    print("KERNEL_OK")
</pallas_src>

<mosaic_0001>
module attributes {stable_mosaic.version = 11 : i64} {
  func.func @_ls_ce_kernel(%arg0: i32, %arg1: memref<32x256xf32, #tpu.memory_space<vmem>>, %arg2: memref<32x1xi32, #tpu.memory_space<vmem>>, %arg3: memref<8x128xf32, #tpu.memory_space<vmem>>) attributes {dimension_semantics = [#tpu.dimension_semantics<parallel>], iteration_bounds = array<i64: 4>, scalar_prefetch = 0 : i64, scratch_operands = 0 : i64, tpu.core_type = #tpu.core_type<tc>, window_params = [{transform_indices = @transform_0, window_bounds = array<i64: 32, 256>}, {transform_indices = @transform_1, window_bounds = array<i64: 32, 1>}, {transform_indices = @transform_2, window_bounds = array<i64: 8, 128>}]} {
    %c0 = arith.constant 0 : index
    %c0_0 = arith.constant 0 : index
    %0 = vector.load %arg1[%c0, %c0_0] : memref<32x256xf32, #tpu.memory_space<vmem>>, vector<32x256xf32>
    %c0_1 = arith.constant 0 : index
    %c0_2 = arith.constant 0 : index
    %1 = vector.load %arg2[%c0_1, %c0_2] : memref<32x1xi32, #tpu.memory_space<vmem>>, vector<32x1xi32>
    %cst = arith.constant dense<0xFF800000> : vector<32xf32>
    %2 = vector.multi_reduction <maximumf>, %0, %cst [1] : vector<32x256xf32> to vector<32xf32>
    %3 = vector.shape_cast %2 : vector<32xf32> to vector<32x1xf32>
    %cst_3 = arith.constant dense<0.000000e+00> : vector<32xf32>
    %4 = vector.multi_reduction <add>, %0, %cst_3 [1] : vector<32x256xf32> to vector<32xf32>
    %5 = vector.shape_cast %4 : vector<32xf32> to vector<32x1xf32>
    %6 = vector.broadcast %3 : vector<32x1xf32> to vector<32x256xf32>
    %7 = arith.subf %0, %6 : vector<32x256xf32>
    %8 = math.exp %7 : vector<32x256xf32>
    %cst_4 = arith.constant dense<0.000000e+00> : vector<32xf32>
    %9 = vector.multi_reduction <add>, %8, %cst_4 [1] : vector<32x256xf32> to vector<32xf32>
    %10 = vector.shape_cast %9 : vector<32xf32> to vector<32x1xf32>
    %11 = math.log %10 : vector<32x1xf32>
    %12 = arith.addf %3, %11 : vector<32x1xf32>
    %13 = tpu.iota {dimensions = array<i32: 1>} : vector<32x256xi32>
    %14 = vector.broadcast %1 : vector<32x1xi32> to vector<32x256xi32>
    %15 = arith.cmpi eq, %13, %14 : vector<32x256xi32>
    %cst_5 = arith.constant 0.000000e+00 : f32
    %16 = vector.broadcast %cst_5 : f32 to vector<32x256xf32>
    %17 = arith.select %15, %0, %16 : vector<32x256xi1>, vector<32x256xf32>
    %cst_6 = arith.constant dense<0.000000e+00> : vector<32xf32>
    %18 = vector.multi_reduction <add>, %17, %cst_6 [1] : vector<32x256xf32> to vector<32xf32>
    %19 = vector.shape_cast %18 : vector<32xf32> to vector<32x1xf32>
    %20 = tpu.iota {dimensions = array<i32: 0>} : vector<32x1xi32>
    %c32_i32 = arith.constant 32 : i32
    %21 = arith.muli %arg0, %c32_i32 : i32
    %c0_i32 = arith.constant 0 : i32
    %22 = arith.addi %21, %c0_i32 : i32
    %23 = vector.broadcast %22 : i32 to vector<32x1xi32>
    %24 = arith.addi %23, %20 : vector<32x1xi32>
    %c100_i32 = arith.constant 100 : i32
    %25 = vector.broadcast %c100_i32 : i32 to vector<32x1xi32>
    %26 = arith.cmpi slt, %24, %25 : vector<32x1xi32>
    %27 = arith.subf %12, %19 : vector<32x1xf32>
    %cst_7 = arith.constant 0.000000e+00 : f32
    %28 = vector.broadcast %cst_7 : f32 to vector<32x1xf32>
    %29 = arith.select %26, %27, %28 : vector<32x1xi1>, vector<32x1xf32>
    %cst_8 = arith.constant 2.560000e+02 : f32
    %30 = vector.broadcast %cst_8 : f32 to vector<32x1xf32>
    %31 = arith.mulf %30, %12 : vector<32x1xf32>
    %32 = arith.subf %31, %5 : vector<32x1xf32>
    %cst_9 = arith.constant 0.000000e+00 : f32
    %33 = vector.broadcast %cst_9 : f32 to vector<32x1xf32>
    %34 = arith.select %26, %32, %33 : vector<32x1xi1>, vector<32x1xf32>
    %cst_10 = arith.constant dense<0.000000e+00> : vector<1xf32>
    %35 = vector.multi_reduction <add>, %29, %cst_10 [0] : vector<32x1xf32> to vector<1xf32>
    %36 = vector.shape_cast %35 : vector<1xf32> to vector<1x1xf32>
    %cst_11 = arith.constant dense<0.000000e+00> : vector<1xf32>
    %37 = vector.multi_reduction <add>, %34, %cst_11 [0] : vector<32x1xf32> to vector<1xf32>
    %38 = vector.shape_cast %37 : vector<1xf32> to vector<1x1xf32>
    %39 = tpu.iota {dimensions = array<i32: 1>} : vector<8x128xi32>
    %40 = tpu.iota {dimensions = array<i32: 0>} : vector<8x128xi32>
    %c0_i32_12 = arith.constant 0 : i32
    %41 = vector.broadcast %c0_i32_12 : i32 to vector<8x128xi32>
    %42 = arith.cmpi eq, %40, %41 : vector<8x128xi32>
    %c0_i32_13 = arith.constant 0 : i32
    %43 = vector.broadcast %c0_i32_13 : i32 to vector<8x128xi32>
    %44 = arith.cmpi eq, %39, %43 : vector<8x128xi32>
    %45 = arith.andi %42, %44 : vector<8x128xi1>
    %46 = vector.extract %36[0, 0] : f32 from vector<1x1xf32>
    %c0_i32_14 = arith.constant 0 : i32
    %47 = vector.broadcast %c0_i32_14 : i32 to vector<8x128xi32>
    %48 = arith.cmpi eq, %40, %47 : vector<8x128xi32>
    %c1_i32 = arith.constant 1 : i32
    %49 = vector.broadcast %c1_i32 : i32 to vector<8x128xi32>
    %50 = arith.cmpi eq, %39, %49 : vector<8x128xi32>
    %51 = arith.andi %48, %50 : vector<8x128xi1>
    %52 = vector.extract %38[0, 0] : f32 from vector<1x1xf32>
    %cst_15 = arith.constant 0.000000e+00 : f32
    %53 = vector.broadcast %52 : f32 to vector<8x128xf32>
    %54 = vector.broadcast %cst_15 : f32 to vector<8x128xf32>
    %55 = arith.select %51, %53, %54 : vector<8x128xi1>, vector<8x128xf32>
    %56 = vector.broadcast %46 : f32 to vector<8x128xf32>
    %57 = arith.select %45, %56, %55 : vector<8x128xi1>, vector<8x128xf32>
    %c0_16 = arith.constant 0 : index
    %c0_17 = arith.constant 0 : index
    %58 = vector.load %arg3[%c0_16, %c0_17] : memref<8x128xf32, #tpu.memory_space<vmem>>, vector<8x128xf32>
    tpu.vector_store %arg3[%c0_16, %c0_17], %57 {strides = array<i32>} : memref<8x128xf32, #tpu.memory_space<vmem>>, vector<8x128xf32>,
    return
  }
  func.func @transform_0(%arg0: i32) -> (i32, i32) {
    %c0_i32 = arith.constant 0 : i32
    %c0_i32_0 = arith.constant 0 : i32
    return %arg0, %c0_i32 : i32, i32
  }
  func.func @transform_1(%arg0: i32) -> (i32, i32) {
    %c0_i32 = arith.constant 0 : i32
    %c0_i32_0 = arith.constant 0 : i32
    return %arg0, %c0_i32 : i32, i32
  }
  func.func @transform_2(%arg0: i32) -> (i32, i32) {
    %c0_i32 = arith.constant 0 : i32
    %c0_i32_0 = arith.constant 0 : i32
    return %arg0, %c0_i32 : i32, i32
  }
}

</mosaic_0001>

<llo_original>
// kernel: tpu_custom_call.1
$region0: #{tpu_custom_call.1}
  #allocation0 [shape = 'u32[]', space=smem, size = 0x4, offset = 0x4, fixed_abs, tag = 'smem constant byte address 0x4 - core index']
  #allocation1 [shape = 'u32[144,128]{1,0:T(1,128)}', space=vmem, size = 0x12000, scoped, tag = 'internal scratch']
  %s0 = inlined_call_operand.hbm [shape: f32[100,256], index: 0, kind: input, shape index: {}]
  %s1 = inlined_call_operand.vmem [shape: s32[100,1], index: 1, kind: input, shape index: {}]
  %s2 = inlined_call_operand.hbm [shape: f32[32,128], index: 2, kind: output, shape index: {}]
  %s3 = sld [smem:[#allocation0]]
  $region45: #{tpu_custom_call.1} parent=0
    _
  %s5 = ssub.s32 1, %s3
  %s6 = scalar_select 0, %s5, %s3
  $region1: #{tpu_custom_call.1} parent=0
    #allocation2 [shape = 'u8[65536]{0}', space=vmem, size = 0x10000, scoped, tag = 'input window, operand 0']
    #allocation3 [shape = 's32[2]{0}', space=sflag, size = 0x8, scoped, tag = 'scoped memory for tpu_custom_call.1']
    #allocation4 [shape = 's32[2]{0}', space=sflag, size = 0x8, scoped, tag = 'scoped memory for tpu_custom_call.1']
    #allocation5 [shape = 'u8[8192]{0}', space=vmem, size = 0x2000, scoped, tag = 'output window, operand 0']
    %7 = vsyncpa [#allocation3], 0
    %s8 = scalar_lea.sflag [#allocation3], 1
    %9 = vsyncpa %s8, 0
    %10 = vsyncpa [#allocation4], 0
    %s11 = scalar_lea.sflag [#allocation4], 1
    %12 = vsyncpa %s11, 0
    loop: start=0, step=1, limit=6
    $region2: #{tpu_custom_call.1} parent=1 // loop_pre_header
      _
    $region3: #{tpu_custom_call.1} parent=1 // loop_header
      %s14 = sphi 0, %s18
      %p15 = scmp.ge.s32.totalorder %s14, 6
      %s24 = sphi 0, %s26
      %s27 = sphi 0, %s24
      %s28 = sphi 0, %s27
      %s44 = sphi 0, %s28
      %s50 = sphi 0, %s52
      %s53 = sphi 0, %s50
      %s54 = sphi 0, %s53
      %s70 = sphi 0, %s54
      %s76 = sphi 0, %s78
      %s79 = sphi 0, %s76
      %s80 = sphi 0, %s79
      %s96 = sphi 0, %s80
    $region4: #{tpu_custom_call.1} parent=1 // loop_header_branch
      %17 = sbr.rel (%p15) target = $region8
    $region5: #{tpu_custom_call.1} parent=1 // loop_body
      %s19 = ssub.s32 %s14, 1
      %s20 = ssub.s32 %s14, 2
      %s21 = sadd.s32 %s14, 1
      %s22 = ssub.s32 %s14, %s21
      %p23 = scmp.eq.s32.totalorder %s22, 0
      %s25 = sadd.s32 %s24, 1
      %s26 = scalar_select %p23, %s24, %s25
      %p29 = pneg %p23
      %p30 = scmp.eq.s32.totalorder %s14, 3
      %p31 = por %p29, %p30
      %p32 = scmp.ne.s32.totalorder %s24, %s27
      %p33 = scmp.eq.s32.totalorder %s14, 0
      %p34 = por %p32, %p33
      %p35 = scmp.ne.s32.totalorder %s24, %s27
      %p36 = scmp.eq.s32.totalorder %s19, 3
      %p37 = por %p35, %p36
      %p38 = scmp.ne.s32.totalorder %s27, %s28
      %p39 = scmp.eq.s32.totalorder %s19, 0
      %p40 = por %p38, %p39
      %p41 = scmp.ne.s32.totalorder %s27, %s28
      %p42 = scmp.eq.s32.totalorder %s20, 3
      %p43 = por %p41, %p42
      %p45 = scmp.ne.s32.totalorder %s28, %s44
      %p46 = scmp.eq.s32.totalorder %s20, 0
      %p47 = por %p45, %p46
      %s48 = ssub.s32 %s14, %s21
      %p49 = scmp.eq.s32.totalorder %s48, 0
      %s51 = sadd.s32 %s50, 1
      %s52 = scalar_select %p49, %s50, %s51
      %p55 = pneg %p49
      %p56 = scmp.eq.s32.totalorder %s14, 3
      %p57 = por %p55, %p56
      %p58 = scmp.ne.s32.totalorder %s50, %s53
      %p59 = scmp.eq.s32.totalorder %s14, 0
      %p60 = por %p58, %p59
      %p61 = scmp.ne.s32.totalorder %s50, %s53
      %p62 = scmp.eq.s32.totalorder %s19, 3
      %p63 = por %p61, %p62
      %p64 = scmp.ne.s32.totalorder %s53, %s54
      %p65 = scmp.eq.s32.totalorder %s19, 0
      %p66 = por %p64, %p65
      %p67 = scmp.ne.s32.totalorder %s53, %s54
      %p68 = scmp.eq.s32.totalorder %s20, 3
      %p69 = por %p67, %p68
      %p71 = scmp.ne.s32.totalorder %s54, %s70
      %p72 = scmp.eq.s32.totalorder %s20, 0
      %p73 = por %p71, %p72
      %s74 = ssub.s32 %s14, %s21
      %p75 = scmp.eq.s32.totalorder %s74, 0
      %s77 = sadd.s32 %s76, 1
      %s78 = scalar_select %p75, %s76, %s77
      %p81 = pneg %p75
      %p82 = scmp.eq.s32.totalorder %s14, 3
      %p83 = por %p81, %p82
      %p84 = scmp.ne.s32.totalorder %s76, %s79
      %p85 = scmp.eq.s32.totalorder %s14, 0
      %p86 = por %p84, %p85
      %p87 = scmp.ne.s32.totalorder %s76, %s79
      %p88 = scmp.eq.s32.totalorder %s19, 3
      %p89 = por %p87, %p88
      %p90 = scmp.ne.s32.totalorder %s79, %s80
      %p91 = scmp.eq.s32.totalorder %s19, 0
      %p92 = por %p90, %p91
      %p93 = scmp.ne.s32.totalorder %s79, %s80
      %p94 = scmp.eq.s32.totalorder %s20, 3
      %p95 = por %p93, %p94
      %p97 = scmp.ne.s32.totalorder %s80, %s96
      %p98 = scmp.eq.s32.totalorder %s20, 0
      %p99 = por %p97, %p98
      %p100 = scmp.le.s32.totalorder 1, %s14
      %p101 = scmp.lt.s32.totalorder %s14, 5
      %p102 = pnand %p100, %p101
      %p103 = pneg %p102
      // Predicated region
      $region9: #{tpu_custom_call.1} parent=5 // pred_check
        _
      $region10: #{tpu_custom_call.1} parent=5 // pred_check_branch
        %105 = sbr.rel (%p102) target = $region12
      $region11: #{tpu_custom_call.1} parent=5 // pred_region
        %s106 = ssub.s32 %s14, 1
      $region12: #{tpu_custom_call.1} parent=5 // pred_fallthru
        _
      %p107 = scmp.lt.s32.totalorder %s14, 4
      // Predicated region
      $region13: #{tpu_custom_call.1} parent=5 // pred_check
        %p108 = pneg %p107
      $region14: #{tpu_custom_call.1} parent=5 // pred_check_branch
        %110 = sbr.rel (%p108) target = $region16
      $region15: #{tpu_custom_call.1} parent=5 // pred_region
        // Predicated region
        $region17: #{tpu_custom_call.1} parent=15 // pred_check
          %p111 = pneg %p34
        $region18: #{tpu_custom_call.1} parent=15 // pred_check_branch
          %113 = sbr.rel (%p111) target = $region20
        $region19: #{tpu_custom_call.1} parent=15 // pred_region
          %s114 = sand.u32 %s24, 1
          %s115 = scalar_lea.sflag [#allocation3], %s114
          %s116 = sand.u32 %s24, 1
          %s117 = smul.addr %s116, 64
          %s118 = scalar_lea.vmem [#allocation2], %s117
          %s119 = smul.u32 4, %s14
          %s120 = ssub.s32 13, %s119
          %p121 = scmp.lt.s32.totalorder %s120, 4
          %s122 = scalar_select %p121, %s120, 4
          %s123 = smul.u32 128, %s122
          %s124 = smul.u32 %s123, 2
          %s126 = ssub.s32 1024, %s124
          %127 = vsyncadd %s115, %s126
          %p128 = scmp.ne.s32.totalorder 0, %s124
          %s129 = smul.addr %s119, 2
          %s130 = smul.addr %s129, 128
          %s131 = scalar_lea.hbm %s0, %s130
          %s132 = smul.u32 16, %s122
          %s133 = sshll.u32 %s118, 4
          %s134 = int_to_ptr.vmem [resolvable:$true] %s133
          %s135 = sshll.u32 %s132, 4
          %139 = dma.hbm_to_vmem [thread:$0]  (%p128), %s131, %s135, %s134, %s115, 256, 256, 16
        $region20: #{tpu_custom_call.1} parent=15 // pred_fallthru
          _
        // Predicated region
        $region21: #{tpu_custom_call.1} parent=15 // pred_check
          %p140 = pneg %p60
        $region22: #{tpu_custom_call.1} parent=15 // pred_check_branch
          %142 = sbr.rel (%p140) target = $region24
        $region23: #{tpu_custom_call.1} parent=15 // pred_region
          %s143 = smul.u32 4, %s14
          %s144 = ssub.s32 13, %s143
          %p145 = scmp.lt.s32.totalorder %s144, 4
          %s146 = scalar_select %p145, %s144, 4
          %s147 = smul.u32 128, %s146
          %p148 = scmp.lt.s32.totalorder %s143, 12
          %s149 = scalar_select %p148, %s143, 12
          %s150 = smul.addr %s149, 8
          %s151 = scalar_lea.vmem %s1, %s150
          %s152 = smul.u32 4, %s14
          %s153 = ssub.s32 13, %s152
          %p154 = scmp.lt.s32.totalorder %s153, 4
          %s155 = scalar_select %p154, %s153, 4
          %s156 = smul.u32 128, %s155
        $region24: #{tpu_custom_call.1} parent=15 // pred_fallthru
          _
      $region16: #{tpu_custom_call.1} parent=5 // pred_fallthru
        _
      %p157 = scmp.le.s32.totalorder 1, %s14
      %p158 = scmp.lt.s32.totalorder %s14, 5
      %p159 = pnand %p157, %p158
      %p160 = pneg %p159
      // Predicated region
      $region25: #{tpu_custom_call.1} parent=5 // pred_check
        _
      $region26: #{tpu_custom_call.1} parent=5 // pred_check_branch
        %162 = sbr.rel (%p159) target = $region28
      $region27: #{tpu_custom_call.1} parent=5 // pred_region
        %s163 = ssub.s32 %s14, 1
        %s164 = sand.u32 %s27, 1
        %s165 = scalar_lea.sflag [#allocation3], %s164
        %s166 = sand.u32 %s27, 1
        %s167 = smul.addr %s166, 64
        %s168 = scalar_lea.vmem [#allocation2], %s167
        // Predicated region
        $region29: #{tpu_custom_call.1} parent=27 // pred_check
          %p169 = pneg %p40
        $region30: #{tpu_custom_call.1} parent=27 // pred_check_branch
          %171 = sbr.rel (%p169) target = $region32
        $region31: #{tpu_custom_call.1} parent=27 // pred_region
          %172 = dma.done %s165, 1024
        $region32: #{tpu_custom_call.1} parent=27 // pred_fallthru
          _
        %s173 = sand.u32 %s27, 1
        %s174 = scalar_lea.sflag [#allocation3], %s173
        %s175 = sand.u32 %s27, 1
        %s176 = smul.addr %s175, 64
        %s177 = scalar_lea.vmem [#allocation2], %s176
        %p178 = pneg %p40
        %p179 = pneg %p37
        %s180 = smul.u32 4, %s19
        %s181 = ssub.s32 13, %s180
        %p182 = scmp.lt.s32.totalorder %s181, 4
        %s183 = scalar_select %p182, %s181, 4
        %s184 = smul.u32 128, %s183
        %p185 = scmp.lt.s32.totalorder %s180, 12
        %s186 = scalar_select %p185, %s180, 12
        %s187 = smul.addr %s186, 8
        %s188 = scalar_lea.vmem %s1, %s187
        %p189 = pneg %p66
        %p190 = pneg %p63
        %p191 = pneg %p92
        %p192 = pneg %p89
        %s193 = sand.u32 %s79, 1
        %s194 = scalar_lea.sflag [#allocation4], %s193
        %s195 = sand.u32 %s79, 1
        %s196 = smul.addr %s195, 8
        %s197 = scalar_lea.vmem [#allocation5], %s196
        %s198 = smul.u32 4, %s19
        %s199 = ssub.s32 13, %s198
        %p200 = scmp.lt.s32.totalorder %s199, 4
        %s201 = scalar_select %p200, %s199, 4
        %s202 = smul.u32 128, %s201
        %s203 = smul.u32 %s202, 2
        %s204 = smul.u32 4, %s19
        %s205 = ssub.s32 13, %s204
        %p206 = scmp.lt.s32.totalorder %s205, 4
        %s207 = scalar_select %p206, %s205, 4
        %s208 = smul.u32 128, %s207
        %p209 = scmp.lt.s32.totalorder %s204, 12
        %s210 = scalar_select %p209, %s204, 12
        %s211 = smul.addr %s210, 8
        %s212 = scalar_lea.vmem %s1, %s211
        %s213 = smul.u32 4, %s19
        %s214 = ssub.s32 13, %s213
        %p215 = scmp.lt.s32.totalorder %s214, 4
        %s216 = scalar_select %p215, %s214, 4
        %s217 = smul.u32 128, %s216
        %v218 = vld [vmem:[%s168] sm:$0xff]
        %v219 = vld [vmem:[%s168 + $0x8] sm:$0xff]
        %v220 = vld [vmem:[%s168 + $0x10] sm:$0xff]
        %v221 = vld [vmem:[%s168 + $0x18] sm:$0xff]
        %v222 = vld [vmem:[%s168 + $0x20] sm:$0xff]
        %v223 = vld [vmem:[%s168 + $0x28] sm:$0xff]
        %v224 = vld [vmem:[%s168 + $0x30] sm:$0xff]
        %v225 = vld [vmem:[%s168 + $0x38] sm:$0xff]
        %v226 = vld [vmem:[%s212] sm:$0xff]
        %v227 = vld [vmem:[%s212 + $0x8] sm:$0xff]
        %v228 = vld [vmem:[%s212 + $0x10] sm:$0xff]
        %v229 = vld [vmem:[%s212 + $0x18] sm:$0xff]
        %v230 = vmax.f32 %v218, %v219
        %231 = vmax.xlane.f32.xlu0 %v230
        %v232 = vpop.xlane.xlu0 %231
        %v233 = vmax.f32 %v220, %v221
        %234 = vmax.xlane.f32.xlu0 %v233
        %v235 = vpop.xlane.xlu0 %234
        %v236 = vmax.f32 %v222, %v223
        %237 = vmax.xlane.f32.xlu0 %v236
        %v238 = vpop.xlane.xlu0 %237
        %v239 = vmax.f32 %v224, %v225
        %240 = vmax.xlane.f32.xlu0 %v239
        %v241 = vpop.xlane.xlu0 %240
        %v242 = vadd.f32 %v218, %v219
        %243 = vadd.xlane.f32.xlu0 %v242
        %v244 = vpop.xlane.xlu0 %243
        %v245 = vadd.f32 %v220, %v221
        %246 = vadd.xlane.f32.xlu0 %v245
        %v247 = vpop.xlane.xlu0 %246
        %v248 = vadd.f32 %v222, %v223
        %249 = vadd.xlane.f32.xlu0 %v248
        %v250 = vpop.xlane.xlu0 %249
        %v251 = vadd.f32 %v224, %v225
        %252 = vadd.xlane.f32.xlu0 %v251
        %v253 = vpop.xlane.xlu0 %252
        %v254 = vsub.f32 %v218, %v232
        %v255 = vsub.f32 %v219, %v232
        %v256 = vsub.f32 %v220, %v235
        %v257 = vsub.f32 %v221, %v235
        %v258 = vsub.f32 %v222, %v238
        %v259 = vsub.f32 %v223, %v238
        %v260 = vsub.f32 %v224, %v241
        %v261 = vsub.f32 %v225, %v241
        %v262 = vmul.f32 %v254, 1.442695
        %v263 = vpow.pop %v262
        %v264 = vmul.f32 %v255, 1.442695
        %v265 = vpow.pop %v264
        %v266 = vmul.f32 %v256, 1.442695
        %v267 = vpow.pop %v266
        %v268 = vmul.f32 %v257, 1.442695
        %v269 = vpow.pop %v268
        %v270 = vmul.f32 %v258, 1.442695
        %v271 = vpow.pop %v270
        %v272 = vmul.f32 %v259, 1.442695
        %v273 = vpow.pop %v272
        %v274 = vmul.f32 %v260, 1.442695
        %v275 = vpow.pop %v274
        %v276 = vmul.f32 %v261, 1.442695
        %v277 = vpow.pop %v276
        %v278 = vadd.f32 %v263, %v265
        %279 = vadd.xlane.f32.xlu0 %v278
        %v280 = vpop.xlane.xlu0 %279
        %v281 = vadd.f32 %v267, %v269
        %282 = vadd.xlane.f32.xlu0 %v281
        %v283 = vpop.xlane.xlu0 %282
        %v284 = vadd.f32 %v271, %v273
        %285 = vadd.xlane.f32.xlu0 %v284
        %v286 = vpop.xlane.xlu0 %285
        %v287 = vadd.f32 %v275, %v277
        %288 = vadd.xlane.f32.xlu0 %v287
        %v289 = vpop.xlane.xlu0 %288
        %v290 = vlog2.pop %v280
        %v291 = vmul.f32 %v290, 0.6931472
        %v292 = vlog2.pop %v283
        %v293 = vmul.f32 %v292, 0.6931472
        %v294 = vlog2.pop %v286
        %v295 = vmul.f32 %v294, 0.6931472
        %v296 = vlog2.pop %v289
        %v297 = vmul.f32 %v296, 0.6931472
        %v298 = vadd.f32 %v232, %v291
        %v299 = vadd.f32 %v235, %v293
        %v300 = vadd.f32 %v238, %v295
        %v301 = vadd.f32 %v241, %v297
        %v302 = vlaneseq
        %v303 = vand.u32 %v302, 127
        %v304 = vadd.s32 %v303, 128
        %305 = vset.pattern.permute.xlu0 0
        %306 = vperm.xlu0 %305, %v226
        %v307 = vpop.permute.xlu0 %306
        %308 = vset.pattern.permute.xlu0 0
        %309 = vperm.xlu0 %308, %v227
        %v310 = vpop.permute.xlu0 %309
        %311 = vset.pattern.permute.xlu0 0
        %312 = vperm.xlu0 %311, %v228
        %v313 = vpop.permute.xlu0 %312
        %314 = vset.pattern.permute.xlu0 0
        %315 = vperm.xlu0 %314, %v229
        %v316 = vpop.permute.xlu0 %315
        %vm317 = vcmp.eq.s32.totalorder %v303, %v307
        %vm318 = vcmp.eq.s32.totalorder %v304, %v307
        %vm319 = vcmp.eq.s32.totalorder %v303, %v310
        %vm320 = vcmp.eq.s32.totalorder %v304, %v310
        %vm321 = vcmp.eq.s32.totalorder %v303, %v313
        %vm322 = vcmp.eq.s32.totalorder %v304, %v313
        %vm323 = vcmp.eq.s32.totalorder %v303, %v316
        %vm324 = vcmp.eq.s32.totalorder %v304, %v316
        %v325 = vsel %vm317, %v218, 0.0
        %v326 = vsel %vm318, %v219, 0.0
        %v327 = vsel %vm319, %v220, 0.0
        %v328 = vsel %vm320, %v221, 0.0
        %v329 = vsel %vm321, %v222, 0.0
        %v330 = vsel %vm322, %v223, 0.0
        %v331 = vsel %vm323, %v224, 0.0
        %v332 = vsel %vm324, %v225, 0.0
        %v333 = vadd.f32 %v325, %v326
        %334 = vadd.xlane.f32.xlu0 %v333
        %v335 = vpop.xlane.xlu0 %334
        %v336 = vadd.f32 %v327, %v328
        %337 = vadd.xlane.f32.xlu0 %v336
        %v338 = vpop.xlane.xlu0 %337
        %v339 = vadd.f32 %v329, %v330
        %340 = vadd.xlane.f32.xlu0 %v339
        %v341 = vpop.xlane.xlu0 %340
        %v342 = vadd.f32 %v331, %v332
        %343 = vadd.xlane.f32.xlu0 %v342
        %v344 = vpop.xlane.xlu0 %343
        %v345 = vlaneseq
        %v346 = vshrl.u32 %v345, 7
        %v347 = vadd.s32 %v346, 8
        %v348 = vadd.s32 %v346, 16
        %v349 = vadd.s32 %v346, 24
        %s350 = smul.u32 %s19, 32
        %v351 = vstv %s350
        %v352 = vadd.s32 %v351, %v346
        %v353 = vadd.s32 %v351, %v347
        %v354 = vadd.s32 %v351, %v348
        %v355 = vadd.s32 %v351, %v349
        %vm356 = vcmp.lt.s32.totalorder %v352, 100
        %vm357 = vcmp.lt.s32.totalorder %v353, 100
        %vm358 = vcmp.lt.s32.totalorder %v354, 100
        %vm359 = vcmp.lt.s32.totalorder %v355, 100
        %v360 = vsub.f32 %v298, %v335
        %v361 = vsub.f32 %v299, %v338
        %v362 = vsub.f32 %v300, %v341
        %v363 = vsub.f32 %v301, %v344
        %v364 = vsel %vm356, %v360, 0.0
        %v365 = vsel %vm357, %v361, 0.0
        %v366 = vsel %vm358, %v362, 0.0
        %v367 = vsel %vm359, %v363, 0.0
        %v368 = vmul.f32 %v298, 256.0
        %v369 = vmul.f32 %v299, 256.0
        %v370 = vmul.f32 %v300, 256.0
        %v371 = vmul.f32 %v301, 256.0
        %v372 = vsub.f32 %v368, %v244
        %v373 = vsub.f32 %v369, %v247
        %v374 = vsub.f32 %v370, %v250
        %v375 = vsub.f32 %v371, %v253
        %v376 = vsel %vm356, %v372, 0.0
        %v377 = vsel %vm357, %v373, 0.0
        %v378 = vsel %vm358, %v374, 0.0
        %v379 = vsel %vm359, %v375, 0.0
        %v380 = vadd.f32 %v364, %v365
        %v381 = vadd.f32 %v380, %v366
        %v382 = vadd.f32 %v381, %v367
        %v383 = vrot.slane %v382, 4
        %v384 = vadd.f32 %v382, %v383
        %v385 = vrot.slane %v384, 2
        %v386 = vadd.f32 %v384, %v385
        %v387 = vrot.slane %v386, 1
        %v388 = vadd.f32 %v386, %v387
        %v389 = vadd.f32 %v376, %v377
        %v390 = vadd.f32 %v389, %v378
        %v391 = vadd.f32 %v390, %v379
        %v392 = vrot.slane %v391, 4
        %v393 = vadd.f32 %v391, %v392
        %v394 = vrot.slane %v393, 2
        %v395 = vadd.f32 %v393, %v394
        %v396 = vrot.slane %v395, 1
        %v397 = vadd.f32 %v395, %v396
        %vm398 = vcmp.eq.s32.totalorder %v346, 0
        %vm399 = vcmp.eq.s32.totalorder %v303, 0
        %vm400 = vmand %vm398, %vm399
        %s401 = vtos %v388
        %vm402 = vcmp.eq.s32.totalorder %v303, 1
        %vm403 = vmand %vm398, %vm402
        %s404 = vtos %v397
        %v405 = vstv %s404
        %v406 = vsel %vm403, %v405, 0.0
        %v407 = vstv %s401
        %v408 = vsel %vm400, %v407, %v406
        %409 = vst [vmem:[%s197] sm:$0xff] %v408
        %s410 = sand.u32 %s79, 1
        %s411 = scalar_lea.sflag [#allocation4], %s410
        %s412 = sand.u32 %s79, 1
        %s413 = smul.addr %s412, 8
        %s414 = scalar_lea.vmem [#allocation5], %s413
        // Predicated region
        $region33: #{tpu_custom_call.1} parent=27 // pred_check
          %p415 = pneg %p89
        $region34: #{tpu_custom_call.1} parent=27 // pred_check_branch
          %417 = sbr.rel (%p415) target = $region36
        $region35: #{tpu_custom_call.1} parent=27 // pred_region
          %s419 = ssub.s32 128, 128
          %420 = vsyncadd %s411, %s419
          %s421 = smul.addr %s19, 128
          %s422 = scalar_lea.hbm %s2, %s421
          %s424 = sshll.u32 %s414, 4
          %s425 = int_to_ptr.vmem [resolvable:$true] %s424
          %427 = dma.vmem_to_hbm [thread:$0]  %s425, 128, %s422, %s411
        $region36: #{tpu_custom_call.1} parent=27 // pred_fallthru
          _
      $region28: #{tpu_custom_call.1} parent=5 // pred_fallthru
        _
      %p428 = scmp.le.s32.totalorder 2, %s14
      // Predicated region
      $region37: #{tpu_custom_call.1} parent=5 // pred_check
        %p429 = pneg %p428
      $region38: #{tpu_custom_call.1} parent=5 // pred_check_branch
        %431 = sbr.rel (%p429) target = $region40
      $region39: #{tpu_custom_call.1} parent=5 // pred_region
        %s432 = ssub.s32 %s14, 2
        // Predicated region
        $region41: #{tpu_custom_call.1} parent=39 // pred_check
          %p433 = pneg %p95
        $region42: #{tpu_custom_call.1} parent=39 // pred_check_branch
          %435 = sbr.rel (%p433) target = $region44
        $region43: #{tpu_custom_call.1} parent=39 // pred_region
          %s436 = sand.u32 %s80, 1
          %s437 = scalar_lea.sflag [#allocation4], %s436
          %s438 = sand.u32 %s80, 1
          %s439 = smul.addr %s438, 8
          %s440 = scalar_lea.vmem [#allocation5], %s439
          %441 = dma.done %s437, 128
        $region44: #{tpu_custom_call.1} parent=39 // pred_fallthru
          _
      $region40: #{tpu_custom_call.1} parent=5 // pred_fallthru
        _
    $region6: #{tpu_custom_call.1} parent=1 // loop_footer
      %s18 = sadd.s32 1, %s14
    $region7: #{tpu_custom_call.1} parent=1 // loop_footer_branch
      %13 = sbr.rel target = $region3
    $region8: #{tpu_custom_call.1} parent=1 // loop_exit
      _
    %442 = vsyncpa [#allocation3], 1
    %s443 = scalar_lea.sflag [#allocation3], 1
    %444 = vsyncpa %s443, 1
    %445 = vsyncpa [#allocation4], 1
    %s446 = scalar_lea.sflag [#allocation4], 1
    %447 = vsyncpa %s446, 1

</llo_original>
